<compile_context>
chip_gen: v5e
topology: v5e:2x2
jax: 0.10.0
libtpu: 0.0.40
codegen_flags: <defaults>
</compile_context>

<pallas_src>
import jax
import jax.numpy as jnp
from jax.experimental import pallas as pl
from jax.experimental.pallas import tpu as pltpu


def _pooler_body(row_ref, w_ref, b_ref, o_ref):
    # row_ref : (1, 1, H)  gathered cls-token row for this batch element (native dtype)
    # w_ref   : (H, 2)     transposed Linear weight (native dtype)
    # b_ref   : (1, 2)     float32 bias
    # o_ref   : (1, 1, 2)  output block for this batch element
    row = row_ref[0]                                                  # (1, H)
    logits = jnp.dot(row, w_ref[...], preferred_element_type=jnp.float32)  # (1, 2) f32 acc
    o_ref[0] = (logits + b_ref[...]).astype(o_ref.dtype)


def _kernel_with_idx(idx_ref, row_ref, w_ref, b_ref, o_ref):
    # idx_ref lives in SMEM (scalar prefetch); it is only consumed by the index_maps.
    del idx_ref
    _pooler_body(row_ref, w_ref, b_ref, o_ref)


def _kernel_last_token(row_ref, w_ref, b_ref, o_ref):
    _pooler_body(row_ref, w_ref, b_ref, o_ref)


def pooler_answer_class(hidden_states, weight, bias, cls_index=None):
    """hidden_states: (B, S, H); weight: (2, H); bias: (2,); cls_index: (B,) int or None."""
    B, S, H = hidden_states.shape
    out_dtype = hidden_states.dtype

    # Free (layout-preserving) view: gathered axis becomes the leading, untiled dim.
    h_flat = hidden_states.reshape(B * S, 1, H)
    w_t = weight.T                                  # (H, 2), keep native dtype for the MXU
    b2d = bias.reshape(1, 2).astype(jnp.float32)    # tiny; f32 for the VPU add (v5e-safe)

    out_shape = jax.ShapeDtypeStruct((B, 1, 2), out_dtype)
    cparams = pltpu.CompilerParams(dimension_semantics=("parallel",))

    if cls_index is None:
        # Last-token path: static index_map, no scalar prefetch needed.
        grid_spec = pltpu.PrefetchScalarGridSpec(
            num_scalar_prefetch=0,
            grid=(B,),
            in_specs=[
                pl.BlockSpec((1, 1, H), lambda b: (b * S + S - 1, 0, 0)),
                pl.BlockSpec((H, 2), lambda b: (0, 0)),
                pl.BlockSpec((1, 2), lambda b: (0, 0)),
            ],
            out_specs=pl.BlockSpec((1, 1, 2), lambda b: (b, 0, 0)),
        )
        out = pl.pallas_call(
            _kernel_last_token,
            out_shape=out_shape,
            grid_spec=grid_spec,
            compiler_params=cparams,
        )(h_flat, w_t, b2d)
    else:
        idx = cls_index.astype(jnp.int32)           # (B,) -> SMEM via scalar prefetch
        grid_spec = pltpu.PrefetchScalarGridSpec(
            num_scalar_prefetch=1,
            grid=(B,),
            in_specs=[
                # Gather: only the selected row of each batch element is DMA'd.
                pl.BlockSpec((1, 1, H), lambda b, idx_ref: (b * S + idx_ref[b], 0, 0)),
                pl.BlockSpec((H, 2), lambda b, idx_ref: (0, 0)),
                pl.BlockSpec((1, 2), lambda b, idx_ref: (0, 0)),
            ],
            out_specs=pl.BlockSpec((1, 1, 2), lambda b, idx_ref: (b, 0, 0)),
        )
        out = pl.pallas_call(
            _kernel_with_idx,
            out_shape=out_shape,
            grid_spec=grid_spec,
            compiler_params=cparams,
        )(idx, h_flat, w_t, b2d)

    return out.reshape(B, 2)


def _reference(hidden_states, weight, bias, cls_index=None):
    if cls_index is None:
        cls_state = hidden_states[:, -1, :]
    else:
        cls_state = jnp.take_along_axis(
            hidden_states, cls_index[:, None, None].astype(jnp.int32), axis=1
        )[:, 0, :]
    return cls_state @ weight.T + bias


if __name__ == "__main__":
    key = jax.random.PRNGKey(0)
    k_h, k_w, k_b, k_i = jax.random.split(key, 4)

    B, S, H = 2, 8, 32  # batch, seq, hidden_size

    hidden_states = jax.random.normal(k_h, (B, S, H), dtype=jnp.float32)
    # Deterministic "Linear(hidden_size, 2)" params (synthetic init, not a checkpoint).
    weight = jax.random.normal(k_w, (2, H), dtype=jnp.float32) * 0.05
    bias = jax.random.normal(k_b, (2,), dtype=jnp.float32) * 0.05
    cls_index = jax.random.randint(k_i, (B,), 0, S, dtype=jnp.int32)

    # Case 1: explicit cls_index (scalar-prefetch gather path).
    out1 = jax.block_until_ready(pooler_answer_class(hidden_states, weight, bias, cls_index))
    ref1 = _reference(hidden_states, weight, bias, cls_index)
    assert out1.shape == (B, 2)
    assert jnp.allclose(out1, ref1, atol=1e-5, rtol=1e-5)

    # Case 2: cls_index=None -> uses the last token (static index_map path).
    out2 = jax.block_until_ready(pooler_answer_class(hidden_states, weight, bias, None))
    ref2 = _reference(hidden_states, weight, bias, None)
    assert jnp.allclose(out2, ref2, atol=1e-5, rtol=1e-5)

    print("KERNEL_OK")
</pallas_src>

<mosaic_0001>
module attributes {stable_mosaic.version = 11 : i64} {
  func.func @_kernel_with_idx(%arg0: i32, %arg1: memref<2xi32, #tpu.memory_space<smem>>, %arg2: memref<1x1x32xf32, #tpu.memory_space<vmem>>, %arg3: memref<32x2xf32, #tpu.memory_space<vmem>>, %arg4: memref<1x2xf32, #tpu.memory_space<vmem>>, %arg5: memref<1x1x2xf32, #tpu.memory_space<vmem>>) attributes {dimension_semantics = [#tpu.dimension_semantics<parallel>], iteration_bounds = array<i64: 2>, scalar_prefetch = 1 : i64, scratch_operands = 0 : i64, tpu.core_type = #tpu.core_type<tc>, window_params = [{transform_indices = @transform_0, window_bounds = array<i64: 1, 1, 32>}, {pipeline_mode = #tpu.pipeline_mode<synchronous>, transform_indices = @transform_1, window_bounds = array<i64: 32, 2>}, {pipeline_mode = #tpu.pipeline_mode<synchronous>, transform_indices = @transform_2, window_bounds = array<i64: 1, 2>}, {transform_indices = @transform_3, window_bounds = array<i64: 1, 1, 2>}]} {
    %c0 = arith.constant 0 : index
    %c0_0 = arith.constant 0 : index
    %c0_1 = arith.constant 0 : index
    %0 = vector.load %arg2[%c0, %c0_0, %c0_1] : memref<1x1x32xf32, #tpu.memory_space<vmem>>, vector<1x1x32xf32>
    %1 = vector.shape_cast %0 : vector<1x1x32xf32> to vector<1x32xf32>
    %c0_2 = arith.constant 0 : index
    %c0_3 = arith.constant 0 : index
    %2 = vector.load %arg3[%c0_2, %c0_3] : memref<32x2xf32, #tpu.memory_space<vmem>>, vector<32x2xf32>
    %cst = arith.constant dense<0.000000e+00> : vector<1x2xf32>
    %3 = tpu.matmul %1, %2, %cst {dimension_numbers = #tpu.dot_dimension_numbers<[1], [0], [0], [1], [0, 0, 1, 1], [], []>} : vector<1x32xf32>, vector<32x2xf32>, vector<1x2xf32> -> vector<1x2xf32>
    %c0_4 = arith.constant 0 : index
    %c0_5 = arith.constant 0 : index
    %4 = vector.load %arg4[%c0_4, %c0_5] : memref<1x2xf32, #tpu.memory_space<vmem>>, vector<1x2xf32>
    %5 = arith.addf %3, %4 : vector<1x2xf32>
    %c0_6 = arith.constant 0 : index
    %c0_7 = arith.constant 0 : index
    %c0_8 = arith.constant 0 : index
    %6 = vector.load %arg5[%c0_6, %c0_7, %c0_8] : memref<1x1x2xf32, #tpu.memory_space<vmem>>, vector<1x1x2xf32>
    %7 = vector.shape_cast %6 : vector<1x1x2xf32> to vector<1x2xf32>
    %8 = vector.shape_cast %5 : vector<1x2xf32> to vector<1x1x2xf32>
    tpu.vector_store %arg5[%c0_6, %c0_7, %c0_8], %8 {strides = array<i32>} : memref<1x1x2xf32, #tpu.memory_space<vmem>>, vector<1x1x2xf32>,
    return
  }
  func.func @transform_0(%arg0: i32, %arg1: memref<2xi32, #tpu.memory_space<smem>>) -> (i32, i32, i32) {
    %c8_i32 = arith.constant 8 : i32
    %0 = arith.muli %arg0, %c8_i32 : i32
    %1 = arith.index_cast %arg0 : i32 to index
    %2 = memref.load %arg1[%1] : memref<2xi32, #tpu.memory_space<smem>>
    %3 = arith.addi %0, %2 : i32
    %c0_i32 = arith.constant 0 : i32
    %c0_i32_0 = arith.constant 0 : i32
    %c0_i32_1 = arith.constant 0 : i32
    return %3, %c0_i32, %c0_i32_0 : i32, i32, i32
  }
  func.func @transform_1(%arg0: i32, %arg1: memref<2xi32, #tpu.memory_space<smem>>) -> (i32, i32) {
    %c0_i32 = arith.constant 0 : i32
    %c0_i32_0 = arith.constant 0 : i32
    %c0_i32_1 = arith.constant 0 : i32
    return %c0_i32, %c0_i32_0 : i32, i32
  }
  func.func @transform_2(%arg0: i32, %arg1: memref<2xi32, #tpu.memory_space<smem>>) -> (i32, i32) {
    %c0_i32 = arith.constant 0 : i32
    %c0_i32_0 = arith.constant 0 : i32
    %c0_i32_1 = arith.constant 0 : i32
    return %c0_i32, %c0_i32_0 : i32, i32
  }
  func.func @transform_3(%arg0: i32, %arg1: memref<2xi32, #tpu.memory_space<smem>>) -> (i32, i32, i32) {
    %c0_i32 = arith.constant 0 : i32
    %c0_i32_0 = arith.constant 0 : i32
    %c0_i32_1 = arith.constant 0 : i32
    return %arg0, %c0_i32, %c0_i32_0 : i32, i32, i32
  }
}

</mosaic_0001>

<llo_original>
// kernel: tpu_custom_call.1
$region0: #{tpu_custom_call.1}
  #allocation0 [shape = 'u32[]', space=smem, size = 0x4, offset = 0x4, fixed_abs, tag = 'smem constant byte address 0x4 - core index']
  #allocation1 [shape = 'u32[72,128]{1,0:T(1,128)}', space=vmem, size = 0x9000, scoped, tag = 'internal scratch']
  #allocation2 [shape = 's32[1]{0}', space=sflag, size = 0x4, scoped, tag = 'scoped memory for tpu_custom_call.1']
  #allocation3 [shape = 'u8[512]{0}', space=smem, size = 0x200, scoped, tag = 'prefetched SMEM operand 0']
  %s0 = inlined_call_operand.vmem [shape: s32[2], index: 0, kind: input, shape index: {}]
  %s1 = inlined_call_operand.vmem [shape: f32[16,1,32], index: 1, kind: input, shape index: {}]
  %s2 = inlined_call_operand.vmem [shape: f32[32,2], index: 2, kind: input, shape index: {}]
  %s3 = inlined_call_operand.vmem [shape: f32[1,2], index: 3, kind: input, shape index: {}]
  %s4 = inlined_call_operand.hbm [shape: f32[2,1,2], index: 4, kind: output, shape index: {}]
  %s5 = sld [smem:[#allocation0]]
  $region45: #{tpu_custom_call.1} parent=0
    _
  %s7 = ssub.s32 1, %s5
  %s8 = scalar_select 0, %s7, %s5
  %s10 = sshll.u32 %s0, 4
  %s11 = int_to_ptr.vmem [resolvable:$true] %s10
  %13 = dma.vmem_to_smem %s11, 16, [#allocation3], [#allocation2]
  %15 = dma.done [#allocation2], 16
  %16 = sfence
  $region1: #{tpu_custom_call.1} parent=0
    #allocation4 [shape = 'u8[1024]{0}', space=vmem, size = 0x400, scoped, tag = 'output window, operand 0']
    #allocation5 [shape = 's32[2]{0}', space=sflag, size = 0x8, scoped, tag = 'scoped memory for tpu_custom_call.1']
    %17 = vsyncpa [#allocation5], 0
    %s18 = scalar_lea.sflag [#allocation5], 1
    %19 = vsyncpa %s18, 0
    loop: start=0, step=1, limit=4
    $region2: #{tpu_custom_call.1} parent=1 // loop_pre_header
      _
    $region3: #{tpu_custom_call.1} parent=1 // loop_header
      %s21 = sphi 0, %s25
      %p22 = scmp.ge.s32.totalorder %s21, 4
      %s37 = sphi 0, %s39
      %s40 = sphi 0, %s37
      %s41 = sphi 0, %s40
      %s57 = sphi 0, %s41
      %s61 = sphi 0, %s61
      %s63 = sphi 0, %s61
      %s64 = sphi 0, %s63
      %s78 = sphi 0, %s64
      %s82 = sphi 0, %s82
      %s84 = sphi 0, %s82
      %s85 = sphi 0, %s84
      %s99 = sphi 0, %s85
      %s105 = sphi 0, %s107
      %s108 = sphi 0, %s105
      %s109 = sphi 0, %s108
      %s125 = sphi 0, %s109
    $region4: #{tpu_custom_call.1} parent=1 // loop_header_branch
      %24 = sbr.rel (%p22) target = $region8
    $region5: #{tpu_custom_call.1} parent=1 // loop_body
      %s26 = ssub.s32 %s21, 1
      %s27 = ssub.s32 %s21, 2
      %s28 = sadd.s32 %s21, 1
      %s29 = smul.u32 %s21, 8
      %s30 = sld [smem:[#allocation3 + %s21]]
      %s31 = sadd.s32 %s29, %s30
      %s32 = smul.u32 %s28, 8
      %s33 = sld [smem:[#allocation3 + %s28]]
      %s34 = sadd.s32 %s32, %s33
      %s35 = ssub.s32 %s31, %s34
      %p36 = scmp.eq.s32.totalorder %s35, 0
      %s38 = sadd.s32 %s37, 1
      %s39 = scalar_select %p36, %s37, %s38
      %p42 = pneg %p36
      %p43 = scmp.eq.s32.totalorder %s21, 1
      %p44 = por %p42, %p43
      %p45 = scmp.ne.s32.totalorder %s37, %s40
      %p46 = scmp.eq.s32.totalorder %s21, 0
      %p47 = por %p45, %p46
      %p48 = scmp.ne.s32.totalorder %s37, %s40
      %p49 = scmp.eq.s32.totalorder %s26, 1
      %p50 = por %p48, %p49
      %p51 = scmp.ne.s32.totalorder %s40, %s41
      %p52 = scmp.eq.s32.totalorder %s26, 0
      %p53 = por %p51, %p52
      %p54 = scmp.ne.s32.totalorder %s40, %s41
      %p55 = scmp.eq.s32.totalorder %s27, 1
      %p56 = por %p54, %p55
      %p58 = scmp.ne.s32.totalorder %s41, %s57
      %p59 = scmp.eq.s32.totalorder %s27, 0
      %p60 = por %p58, %p59
      %s62 = sadd.s32 %s61, 1
      %p65 = scmp.eq.s32.totalorder %s21, 1
      %p66 = scmp.ne.s32.totalorder %s61, %s63
      %p67 = scmp.eq.s32.totalorder %s21, 0
      %p68 = por %p66, %p67
      %p69 = scmp.ne.s32.totalorder %s61, %s63
      %p70 = scmp.eq.s32.totalorder %s26, 1
      %p71 = por %p69, %p70
      %p72 = scmp.ne.s32.totalorder %s63, %s64
      %p73 = scmp.eq.s32.totalorder %s26, 0
      %p74 = por %p72, %p73
      %p75 = scmp.ne.s32.totalorder %s63, %s64
      %p76 = scmp.eq.s32.totalorder %s27, 1
      %p77 = por %p75, %p76
      %p79 = scmp.ne.s32.totalorder %s64, %s78
      %p80 = scmp.eq.s32.totalorder %s27, 0
      %p81 = por %p79, %p80
      %s83 = sadd.s32 %s82, 1
      %p86 = scmp.eq.s32.totalorder %s21, 1
      %p87 = scmp.ne.s32.totalorder %s82, %s84
      %p88 = scmp.eq.s32.totalorder %s21, 0
      %p89 = por %p87, %p88
      %p90 = scmp.ne.s32.totalorder %s82, %s84
      %p91 = scmp.eq.s32.totalorder %s26, 1
      %p92 = por %p90, %p91
      %p93 = scmp.ne.s32.totalorder %s84, %s85
      %p94 = scmp.eq.s32.totalorder %s26, 0
      %p95 = por %p93, %p94
      %p96 = scmp.ne.s32.totalorder %s84, %s85
      %p97 = scmp.eq.s32.totalorder %s27, 1
      %p98 = por %p96, %p97
      %p100 = scmp.ne.s32.totalorder %s85, %s99
      %p101 = scmp.eq.s32.totalorder %s27, 0
      %p102 = por %p100, %p101
      %s103 = ssub.s32 %s21, %s28
      %p104 = scmp.eq.s32.totalorder %s103, 0
      %s106 = sadd.s32 %s105, 1
      %s107 = scalar_select %p104, %s105, %s106
      %p110 = pneg %p104
      %p111 = scmp.eq.s32.totalorder %s21, 1
      %p112 = por %p110, %p111
      %p113 = scmp.ne.s32.totalorder %s105, %s108
      %p114 = scmp.eq.s32.totalorder %s21, 0
      %p115 = por %p113, %p114
      %p116 = scmp.ne.s32.totalorder %s105, %s108
      %p117 = scmp.eq.s32.totalorder %s26, 1
      %p118 = por %p116, %p117
      %p119 = scmp.ne.s32.totalorder %s108, %s109
      %p120 = scmp.eq.s32.totalorder %s26, 0
      %p121 = por %p119, %p120
      %p122 = scmp.ne.s32.totalorder %s108, %s109
      %p123 = scmp.eq.s32.totalorder %s27, 1
      %p124 = por %p122, %p123
      %p126 = scmp.ne.s32.totalorder %s109, %s125
      %p127 = scmp.eq.s32.totalorder %s27, 0
      %p128 = por %p126, %p127
      %p129 = scmp.le.s32.totalorder 1, %s21
      %p130 = scmp.lt.s32.totalorder %s21, 3
      %p131 = pnand %p129, %p130
      %p132 = pneg %p131
      // Predicated region
      $region9: #{tpu_custom_call.1} parent=5 // pred_check
        _
      $region10: #{tpu_custom_call.1} parent=5 // pred_check_branch
        %134 = sbr.rel (%p131) target = $region12
      $region11: #{tpu_custom_call.1} parent=5 // pred_region
        %s135 = ssub.s32 %s21, 1
        // Predicated region
        $region13: #{tpu_custom_call.1} parent=11 // pred_check
          %p136 = pneg %p74
        $region14: #{tpu_custom_call.1} parent=11 // pred_check_branch
          %138 = sbr.rel (%p136) target = $region16
        $region15: #{tpu_custom_call.1} parent=11 // pred_region
          _
        $region16: #{tpu_custom_call.1} parent=11 // pred_fallthru
          _
        // Predicated region
        $region17: #{tpu_custom_call.1} parent=11 // pred_check
          %p139 = pneg %p95
        $region18: #{tpu_custom_call.1} parent=11 // pred_check_branch
          %141 = sbr.rel (%p139) target = $region20
        $region19: #{tpu_custom_call.1} parent=11 // pred_region
          _
        $region20: #{tpu_custom_call.1} parent=11 // pred_fallthru
          _
      $region12: #{tpu_custom_call.1} parent=5 // pred_fallthru
        _
      %p142 = scmp.lt.s32.totalorder %s21, 2
      // Predicated region
      $region21: #{tpu_custom_call.1} parent=5 // pred_check
        %p143 = pneg %p142
      $region22: #{tpu_custom_call.1} parent=5 // pred_check_branch
        %145 = sbr.rel (%p143) target = $region24
      $region23: #{tpu_custom_call.1} parent=5 // pred_region
        // Predicated region
        $region25: #{tpu_custom_call.1} parent=23 // pred_check
          %p146 = pneg %p47
        $region26: #{tpu_custom_call.1} parent=23 // pred_check_branch
          %148 = sbr.rel (%p146) target = $region28
        $region27: #{tpu_custom_call.1} parent=23 // pred_region
          %s149 = smul.u32 %s21, 8
          %s150 = sld [smem:[#allocation3 + %s21]]
          %s151 = sadd.s32 %s149, %s150
          %p152 = scmp.lt.s32.totalorder %s151, 15
          %s153 = scalar_select %p152, %s151, 15
          %s154 = scalar_lea.vmem %s1, %s153
          %s155 = smul.u32 %s21, 8
          %s156 = sld [smem:[#allocation3 + %s21]]
          %s157 = sadd.s32 %s155, %s156
        $region28: #{tpu_custom_call.1} parent=23 // pred_fallthru
          _
      $region24: #{tpu_custom_call.1} parent=5 // pred_fallthru
        _
      %p158 = scmp.le.s32.totalorder 1, %s21
      %p159 = scmp.lt.s32.totalorder %s21, 3
      %p160 = pnand %p158, %p159
      %p161 = pneg %p160
      // Predicated region
      $region29: #{tpu_custom_call.1} parent=5 // pred_check
        _
      $region30: #{tpu_custom_call.1} parent=5 // pred_check_branch
        %163 = sbr.rel (%p160) target = $region32
      $region31: #{tpu_custom_call.1} parent=5 // pred_region
        %s164 = ssub.s32 %s21, 1
        %s165 = smul.u32 %s26, 8
        %s166 = sld [smem:[#allocation3 + %s26]]
        %s167 = sadd.s32 %s165, %s166
        %p168 = scmp.lt.s32.totalorder %s167, 15
        %s169 = scalar_select %p168, %s167, 15
        %s170 = scalar_lea.vmem %s1, %s169
        %p171 = pneg %p53
        %p172 = pneg %p50
        %p173 = pneg %p74
        %p174 = pneg %p71
        %p175 = pneg %p95
        %p176 = pneg %p92
        %p177 = pneg %p121
        %p178 = pneg %p118
        %s179 = sand.u32 %s108, 1
        %s180 = scalar_lea.sflag [#allocation5], %s179
        %s181 = sand.u32 %s108, 1
        %s182 = scalar_lea.vmem [#allocation4], %s181
        %s183 = smul.u32 %s26, 8
        %s184 = sld [smem:[#allocation3 + %s26]]
        %s185 = sadd.s32 %s183, %s184
        %p186 = scmp.lt.s32.totalorder %s185, 15
        %s187 = scalar_select %p186, %s185, 15
        %s188 = scalar_lea.vmem %s1, %s187
        %s189 = smul.u32 %s26, 8
        %s190 = sld [smem:[#allocation3 + %s26]]
        %s191 = sadd.s32 %s189, %s190
        %v192 = vld [vmem:[%s188] sm:$0x1]
        %v193 = vld [vmem:[%s2] sm:$0xff]
        %v194 = vld [vmem:[%s2 + $0x8] sm:$0xff]
        %v195 = vld [vmem:[%s2 + $0x10] sm:$0xff]
        %v196 = vld [vmem:[%s2 + $0x18] sm:$0xff]
        %v197 = vld [vmem:[%s3] sm:$0x1]
        %vm198 = vcmask 261120
        %v200 = vsel %vm198, %v192, 0
        %202 = vmatpush.msra.mxu0 0.0
        %203 = vmatpush.msra.mxu0 0.0
        %204 = vmatpush.msra.mxu0 0.0
        %205 = vmatpush.msra.mxu0 0.0
        %206 = vmatpush.msra.mxu0 0.0
        %207 = vmatpush.msra.mxu0 0.0
        %208 = vmatpush.msra.mxu0 0.0
        %209 = vmatpush.msra.mxu0 0.0
        %210 = vmatpush.msra.mxu0 0.0
        %211 = vmatpush.msra.mxu0 0.0
        %212 = vmatpush.msra.mxu0 0.0
        %213 = vmatpush.msra.mxu0 0.0
        %214 = vmatpush.msra.mxu0 %v196
        %215 = vmatpush.msra.mxu0 %v195
        %216 = vmatpush.msra.mxu0 %v194
        %217 = vmatpush.msra.mxu0 %v193
        %218 = vmatmul.f32.gmra.mxu0 %v200
        %v219 = vpop.f32.mrf.mxu0
        %v220 = vadd.f32 %v197, %v219
        %221 = vdwg.mxu0
        %vm222 = vcmask 8192
        %223 = vst.msk [vmem:[%s182] sm:$0x1] %vm222, %v220
        %s224 = sand.u32 %s108, 1
        %s225 = scalar_lea.sflag [#allocation5], %s224
        %s226 = sand.u32 %s108, 1
        %s227 = scalar_lea.vmem [#allocation4], %s226
        // Predicated region
        $region33: #{tpu_custom_call.1} parent=31 // pred_check
          %p228 = pneg %p118
        $region34: #{tpu_custom_call.1} parent=31 // pred_check_branch
          %230 = sbr.rel (%p228) target = $region36
        $region35: #{tpu_custom_call.1} parent=31 // pred_region
          %232 = vsyncadd %s225, 0
          %s233 = scalar_lea.hbm %s4, %s26
          %s235 = sshll.u32 %s227, 4
          %s236 = int_to_ptr.vmem [resolvable:$true] %s235
          %s237 = sshll.u32 %s233, 4
          %s238 = int_to_ptr.hbm [resolvable:$true] %s237
          %240 = dma.vmem_to_hbm [thread:$0]  %s236, 16, %s238, %s225
        $region36: #{tpu_custom_call.1} parent=31 // pred_fallthru
          _
      $region32: #{tpu_custom_call.1} parent=5 // pred_fallthru
        _
      %p241 = scmp.le.s32.totalorder 2, %s21
      // Predicated region
      $region37: #{tpu_custom_call.1} parent=5 // pred_check
        %p242 = pneg %p241
      $region38: #{tpu_custom_call.1} parent=5 // pred_check_branch
        %244 = sbr.rel (%p242) target = $region40
      $region39: #{tpu_custom_call.1} parent=5 // pred_region
        %s245 = ssub.s32 %s21, 2
        // Predicated region
        $region41: #{tpu_custom_call.1} parent=39 // pred_check
          %p246 = pneg %p124
        $region42: #{tpu_custom_call.1} parent=39 // pred_check_branch
          %248 = sbr.rel (%p246) target = $region44
        $region43: #{tpu_custom_call.1} parent=39 // pred_region
          %s249 = sand.u32 %s109, 1
          %s250 = scalar_lea.sflag [#allocation5], %s249
          %s251 = sand.u32 %s109, 1
          %s252 = scalar_lea.vmem [#allocation4], %s251
          %254 = dma.done %s250, 16
        $region44: #{tpu_custom_call.1} parent=39 // pred_fallthru
          _
      $region40: #{tpu_custom_call.1} parent=5 // pred_fallthru
        _
    $region6: #{tpu_custom_call.1} parent=1 // loop_footer
      %s25 = sadd.s32 1, %s21
    $region7: #{tpu_custom_call.1} parent=1 // loop_footer_branch
      %20 = sbr.rel target = $region3
    $region8: #{tpu_custom_call.1} parent=1 // loop_exit
      _
    %255 = vsyncpa [#allocation5], 1
    %s256 = scalar_lea.sflag [#allocation5], 1
    %257 = vsyncpa %s256, 1

</llo_original>
